<compile_context>
chip_gen: v5e
topology: v5e:2x2
jax: 0.10.0
libtpu: 0.0.40
codegen_flags: <defaults>
</compile_context>

<pallas_src>
import functools

import jax
import jax.numpy as jnp
from jax import lax
from jax.experimental import pallas as pl
from jax.experimental.pallas import tpu as pltpu


def _fused_gate_kernel(meta_ref, x_ref, xin_ref, w1_ref, w2_ref, b_ref,
                       scale_ref, o_ref, *, tile_rows):
    """out = sigmoid(x @ W1[seg].T + x_in @ W2[seg].T + b[seg]) * x * scale."""
    row0 = pl.program_id(0) * tile_rows
    half = meta_ref[0]
    num_edges = meta_ref[1]

    x = x_ref[...]
    xin = xin_ref[...]
    scale = scale_ref[...]
    # contract the feature axis against torch-layout (out, in) weights: x @ W.T
    dn = (((1,), (1,)), ((), ()))

    def gated(seg):
        w1 = w1_ref[seg]                      # (D, D)
        w2 = w2_ref[seg]                      # (D, D)
        b = b_ref[seg]                        # (1, D)
        g = (lax.dot_general(x, w1, dn, preferred_element_type=jnp.float32)
             + lax.dot_general(xin, w2, dn, preferred_element_type=jnp.float32)
             + b.astype(jnp.float32))
        return jax.nn.sigmoid(g) * x.astype(jnp.float32) * scale

    # Does this tile straddle one of the segment boundaries (half / num_edges)?
    crosses_half = jnp.logical_and(half > row0, half < row0 + tile_rows)
    crosses_edge = jnp.logical_and(num_edges > row0, num_edges < row0 + tile_rows)
    mixed = jnp.logical_or(crosses_half, crosses_edge)

    @pl.when(jnp.logical_not(mixed))
    def _single_segment():
        seg = ((row0 >= half).astype(jnp.int32)
               + (row0 >= num_edges).astype(jnp.int32))
        o_ref[...] = gated(seg).astype(o_ref.dtype)

    @pl.when(mixed)
    def _boundary_tile():
        rows = row0 + lax.broadcasted_iota(jnp.int32, (tile_rows, 1), 0)
        sid = ((rows >= half).astype(jnp.int32)
               + (rows >= num_edges).astype(jnp.int32))
        out = jnp.where(sid == 0, gated(0),
                        jnp.where(sid == 1, gated(1), gated(2)))
        o_ref[...] = out.astype(o_ref.dtype)


def _pick_tile_rows(m, d, itemsize, vmem_budget=20 * 1024 * 1024, tm_cap=1024):
    """Largest multiple-of-8 row tile fitting the VMEM budget (double-buffered)."""
    resident = 2 * (2 * 3 * d * d * 4 + 3 * d * 4)   # W1/W2/bias stacks, worst case x2 bufs
    per_row = 3 * 2 * d * itemsize + 2 * 4           # x/x_in/out streams (x2 bufs) + scale
    avail = max(vmem_budget - resident, 1 << 20)
    tm = min(avail // per_row, tm_cap)
    tm = max(8, (tm // 8) * 8)
    return m if tm >= m else tm


def prepare_params(params):
    """One-time layout prep (do OUTSIDE jit): stack torch Linear weights, no transposes."""
    d = params["W_in_b"].shape[0]
    w1s = jnp.stack([params["W_in_w"][:, :d],
                     params["W_out_w"][:, :d],
                     params["W_self_w"][:, :d]], axis=0)          # (3, D, D) multiplies src_emb
    w2s = jnp.stack([params["W_in_w"][:, d:],
                     params["W_out_w"][:, d:],
                     params["W_self_w"][:, d:]], axis=0)          # (3, D, D) multiplies src_emb_in
    bs = jnp.stack([params["W_in_b"], params["W_out_b"], params["W_self_b"]],
                   axis=0).reshape(3, 1, d)                       # (3, 1, D)
    return w1s, w2s, bs


def f_dense_op_comp_forward(stacked_params, num_edges, norm, src_emb, src_emb_in,
                            *, tile_rows=None):
    """JAX/Pallas forward matching the PyTorch module (single fused pallas_call)."""
    w1s, w2s, bs = stacked_params
    m, d = src_emb.shape
    if m == 0:
        return jnp.zeros((0, d), src_emb.dtype)

    half = num_edges // 2
    n_self = m - num_edges
    third = jnp.float32(1.0 / 3.0)

    # Per-row scale: norm/3 for edge rows, 1/3 for self rows (handles empty segments).
    scale = jnp.concatenate(
        [(third * norm.astype(jnp.float32)).reshape(num_edges, 1),
         jnp.full((n_self, 1), third, jnp.float32)], axis=0)
    meta = jnp.array([half, num_edges], jnp.int32)

    if tile_rows is None:
        tm = _pick_tile_rows(m, d, src_emb.dtype.itemsize)
    else:
        tm = m if tile_rows >= m else max(8, (tile_rows // 8) * 8)
    n_tiles = pl.cdiv(m, tm)

    itemsize = src_emb.dtype.itemsize
    cost = pl.CostEstimate(
        flops=int(4 * m * d * d + 4 * m * d),
        transcendentals=int(m * d),
        bytes_accessed=int(3 * m * d * itemsize + 2 * 3 * d * d * 4 + 3 * d * 4 + m * 4),
    )

    row_map = lambda i, meta: (i, 0)
    pin_map = lambda i, meta: (0, 0, 0)

    return pl.pallas_call(
        functools.partial(_fused_gate_kernel, tile_rows=tm),
        out_shape=jax.ShapeDtypeStruct((m, d), src_emb.dtype),
        grid_spec=pltpu.PrefetchScalarGridSpec(
            num_scalar_prefetch=1,
            grid=(n_tiles,),
            in_specs=[
                pl.BlockSpec((tm, d), row_map),       # src_emb row tile
                pl.BlockSpec((tm, d), row_map),       # src_emb_in row tile
                pl.BlockSpec((3, d, d), pin_map),     # W1 stack (VMEM resident)
                pl.BlockSpec((3, d, d), pin_map),     # W2 stack (VMEM resident)
                pl.BlockSpec((3, 1, d), pin_map),     # bias stack
                pl.BlockSpec((tm, 1), row_map),       # per-row scale
            ],
            out_specs=pl.BlockSpec((tm, d), row_map),
        ),
        compiler_params=pltpu.CompilerParams(
            dimension_semantics=("parallel",),        # independent row tiles (v7x megacore)
        ),
        cost_estimate=cost,
    )(meta, src_emb, src_emb_in, w1s, w2s, bs, scale)


def _reference_forward(params, num_edges, norm, src_emb, src_emb_in):
    """Pure-JAX reference, literal translation of the PyTorch code."""
    half = num_edges // 2

    def lin(x, w, b):
        return x @ w.T + b

    g_in = lin(jnp.concatenate([src_emb[:half], src_emb_in[:half]], 1),
               params["W_in_w"], params["W_in_b"])
    g_out = lin(jnp.concatenate([src_emb[half:num_edges], src_emb_in[half:num_edges]], 1),
                params["W_out_w"], params["W_out_b"])
    g_self = lin(jnp.concatenate([src_emb[num_edges:], src_emb_in[num_edges:]], 1),
                 params["W_self_w"], params["W_self_b"])
    out_in = jax.nn.sigmoid(g_in) * src_emb[:half]
    out_o = jax.nn.sigmoid(g_out) * src_emb[half:num_edges]
    out_self = jax.nn.sigmoid(g_self) * src_emb[num_edges:]
    m_in_out = jnp.concatenate([out_in / 3.0, out_o / 3.0], 0) * norm[:, None]
    m_self = out_self / 3.0
    return jnp.concatenate([m_in_out, m_self], 0)


def _init_params(key, feature_dim):
    """Deterministic Linear(2D, D) init (uniform +-1/sqrt(fan_in)), torch convention."""
    D = feature_dim
    bound = 1.0 / jnp.sqrt(2.0 * D)
    keys = jax.random.split(key, 6)

    def u(k, shape):
        return jax.random.uniform(k, shape, jnp.float32, -bound, bound)

    return {
        "W_in_w": u(keys[0], (D, 2 * D)), "W_in_b": u(keys[1], (D,)),
        "W_out_w": u(keys[2], (D, 2 * D)), "W_out_b": u(keys[3], (D,)),
        "W_self_w": u(keys[4], (D, 2 * D)), "W_self_b": u(keys[5], (D,)),
    }


if __name__ == "__main__":
    feature_dim = 32       # args['feature_dim']
    num_edges = 48         # g.num_edges()  (even, half = 24)
    num_nodes = 24         # rows of src_emb beyond the edges ("self" rows)
    total_rows = num_edges + num_nodes

    key = jax.random.PRNGKey(0)
    k_p, k_x, k_xin, k_n = jax.random.split(key, 4)

    params = _init_params(k_p, feature_dim)
    src_emb = jax.random.normal(k_x, (total_rows, feature_dim), jnp.float32)
    src_emb_in = jax.random.normal(k_xin, (total_rows, feature_dim), jnp.float32)
    norm = jax.random.uniform(k_n, (num_edges,), jnp.float32, 0.1, 1.0)  # g.edata['norm']

    stacked = prepare_params(params)   # one-time weight layout prep (outside jit)
    ref = _reference_forward(params, num_edges, norm, src_emb, src_emb_in)

    # (a) small explicit tile: exercises multi-tile pipelining + boundary-tile path
    fwd_tiled = jax.jit(functools.partial(
        f_dense_op_comp_forward, stacked, num_edges, tile_rows=16))
    out_tiled = jax.block_until_ready(fwd_tiled(norm, src_emb, src_emb_in))

    # (b) auto tile size (production path: one big pipelined tile here)
    fwd_auto = jax.jit(functools.partial(
        f_dense_op_comp_forward, stacked, num_edges))
    out_auto = jax.block_until_ready(fwd_auto(norm, src_emb, src_emb_in))

    assert out_tiled.shape == (total_rows, feature_dim)
    assert jnp.allclose(out_tiled, ref, atol=1e-4, rtol=1e-4), \
        float(jnp.max(jnp.abs(out_tiled - ref)))
    assert jnp.allclose(out_auto, ref, atol=1e-4, rtol=1e-4), \
        float(jnp.max(jnp.abs(out_auto - ref)))

    print("KERNEL_OK")
</pallas_src>

<mosaic_0001>
module attributes {stable_mosaic.version = 11 : i64} {
  func.func @_fused_gate_kernel(%arg0: i32, %arg1: memref<2xi32, #tpu.memory_space<smem>>, %arg2: memref<16x32xf32, #tpu.memory_space<vmem>>, %arg3: memref<16x32xf32, #tpu.memory_space<vmem>>, %arg4: memref<3x32x32xf32, #tpu.memory_space<vmem>>, %arg5: memref<3x32x32xf32, #tpu.memory_space<vmem>>, %arg6: memref<3x1x32xf32, #tpu.memory_space<vmem>>, %arg7: memref<16x1xf32, #tpu.memory_space<vmem>>, %arg8: memref<16x32xf32, #tpu.memory_space<vmem>>) attributes {dimension_semantics = [#tpu.dimension_semantics<parallel>], iteration_bounds = array<i64: 5>, scalar_prefetch = 1 : i64, scratch_operands = 0 : i64, tpu.core_type = #tpu.core_type<tc>, window_params = [{transform_indices = @transform_0, window_bounds = array<i64: 16, 32>}, {transform_indices = @transform_1, window_bounds = array<i64: 16, 32>}, {pipeline_mode = #tpu.pipeline_mode<synchronous>, transform_indices = @transform_2, window_bounds = array<i64: 3, 32, 32>}, {pipeline_mode = #tpu.pipeline_mode<synchronous>, transform_indices = @transform_3, window_bounds = array<i64: 3, 32, 32>}, {pipeline_mode = #tpu.pipeline_mode<synchronous>, transform_indices = @transform_4, window_bounds = array<i64: 3, 1, 32>}, {transform_indices = @transform_5, window_bounds = array<i64: 16, 1>}, {transform_indices = @transform_6, window_bounds = array<i64: 16, 32>}]} {
    %c16_i32 = arith.constant 16 : i32
    %0 = arith.muli %arg0, %c16_i32 : i32
    %c0 = arith.constant 0 : index
    %1 = memref.load %arg1[%c0] : memref<2xi32, #tpu.memory_space<smem>>
    %c1 = arith.constant 1 : index
    %2 = memref.load %arg1[%c1] : memref<2xi32, #tpu.memory_space<smem>>
    %c0_0 = arith.constant 0 : index
    %c0_1 = arith.constant 0 : index
    %3 = vector.load %arg2[%c0_0, %c0_1] : memref<16x32xf32, #tpu.memory_space<vmem>>, vector<16x32xf32>
    %c0_2 = arith.constant 0 : index
    %c0_3 = arith.constant 0 : index
    %4 = vector.load %arg3[%c0_2, %c0_3] : memref<16x32xf32, #tpu.memory_space<vmem>>, vector<16x32xf32>
    %c0_4 = arith.constant 0 : index
    %c0_5 = arith.constant 0 : index
    %5 = vector.load %arg7[%c0_4, %c0_5] : memref<16x1xf32, #tpu.memory_space<vmem>>, vector<16x1xf32>
    %6 = arith.cmpi sgt, %1, %0 : i32
    %c16_i32_6 = arith.constant 16 : i32
    %7 = arith.addi %0, %c16_i32_6 : i32
    %8 = arith.cmpi slt, %1, %7 : i32
    %9 = arith.andi %6, %8 : i1
    %10 = arith.cmpi sgt, %2, %0 : i32
    %c16_i32_7 = arith.constant 16 : i32
    %11 = arith.addi %0, %c16_i32_7 : i32
    %12 = arith.cmpi slt, %2, %11 : i32
    %13 = arith.andi %10, %12 : i1
    %14 = arith.ori %9, %13 : i1
    %true = arith.constant true
    %15 = arith.xori %14, %true : i1
    %16 = arith.extui %15 : i1 to i32
    %c0_i32 = arith.constant 0 : i32
    %17 = arith.cmpi ne, %16, %c0_i32 : i32
    scf.if %17 {
      %20 = arith.cmpi sge, %0, %1 : i32
      %21 = arith.extui %20 : i1 to i32
      %22 = arith.cmpi sge, %0, %2 : i32
      %23 = arith.extui %22 : i1 to i32
      %24 = arith.addi %21, %23 : i32
      %25 = arith.index_cast %24 : i32 to index
      %c0_9 = arith.constant 0 : index
      %c0_10 = arith.constant 0 : index
      %26 = vector.load %arg4[%25, %c0_9, %c0_10] : memref<3x32x32xf32, #tpu.memory_space<vmem>>, vector<1x32x32xf32>
      %27 = vector.shape_cast %26 : vector<1x32x32xf32> to vector<32x32xf32>
      %28 = arith.index_cast %24 : i32 to index
      %c0_11 = arith.constant 0 : index
      %c0_12 = arith.constant 0 : index
      %29 = vector.load %arg5[%28, %c0_11, %c0_12] : memref<3x32x32xf32, #tpu.memory_space<vmem>>, vector<1x32x32xf32>
      %30 = vector.shape_cast %29 : vector<1x32x32xf32> to vector<32x32xf32>
      %31 = arith.index_cast %24 : i32 to index
      %c0_13 = arith.constant 0 : index
      %c0_14 = arith.constant 0 : index
      %32 = vector.load %arg6[%31, %c0_13, %c0_14] : memref<3x1x32xf32, #tpu.memory_space<vmem>>, vector<1x1x32xf32>
      %33 = vector.shape_cast %32 : vector<1x1x32xf32> to vector<1x32xf32>
      %cst = arith.constant dense<0.000000e+00> : vector<16x32xf32>
      %34 = tpu.matmul %3, %27, %cst {dimension_numbers = #tpu.dot_dimension_numbers<[1], [1], [0], [0], [0, 0, 1, 0], [], []>} : vector<16x32xf32>, vector<32x32xf32>, vector<16x32xf32> -> vector<16x32xf32>
      %cst_15 = arith.constant dense<0.000000e+00> : vector<16x32xf32>
      %35 = tpu.matmul %4, %30, %cst_15 {dimension_numbers = #tpu.dot_dimension_numbers<[1], [1], [0], [0], [0, 0, 1, 0], [], []>} : vector<16x32xf32>, vector<32x32xf32>, vector<16x32xf32> -> vector<16x32xf32>
      %36 = arith.addf %34, %35 : vector<16x32xf32>
      %37 = vector.broadcast %33 : vector<1x32xf32> to vector<16x32xf32>
      %38 = arith.addf %36, %37 : vector<16x32xf32>
      %39 = arith.negf %38 : vector<16x32xf32>
      %40 = math.exp %39 : vector<16x32xf32>
      %cst_16 = arith.constant 1.000000e+00 : f32
      %41 = vector.broadcast %cst_16 : f32 to vector<16x32xf32>
      %42 = arith.addf %41, %40 : vector<16x32xf32>
      %43 = arith.divf %41, %42 : vector<16x32xf32>
      %44 = arith.mulf %43, %3 : vector<16x32xf32>
      %45 = vector.broadcast %5 : vector<16x1xf32> to vector<16x32xf32>
      %46 = arith.mulf %44, %45 : vector<16x32xf32>
      %c0_17 = arith.constant 0 : index
      %c0_18 = arith.constant 0 : index
      %47 = vector.load %arg8[%c0_17, %c0_18] : memref<16x32xf32, #tpu.memory_space<vmem>>, vector<16x32xf32>
      tpu.vector_store %arg8[%c0_17, %c0_18], %46 {strides = array<i32>} : memref<16x32xf32, #tpu.memory_space<vmem>>, vector<16x32xf32>,
    } else {
    }
    %18 = arith.extui %14 : i1 to i32
    %c0_i32_8 = arith.constant 0 : i32
    %19 = arith.cmpi ne, %18, %c0_i32_8 : i32
    scf.if %19 {
      %20 = tpu.iota {dimensions = array<i32: 0>} : vector<16x1xi32>
      %21 = vector.broadcast %0 : i32 to vector<16x1xi32>
      %22 = arith.addi %21, %20 : vector<16x1xi32>
      %23 = vector.broadcast %1 : i32 to vector<16x1xi32>
      %24 = arith.cmpi sge, %22, %23 : vector<16x1xi32>
      %25 = arith.extui %24 : vector<16x1xi1> to vector<16x1xi32>
      %26 = vector.broadcast %2 : i32 to vector<16x1xi32>
      %27 = arith.cmpi sge, %22, %26 : vector<16x1xi32>
      %28 = arith.extui %27 : vector<16x1xi1> to vector<16x1xi32>
      %29 = arith.addi %25, %28 : vector<16x1xi32>
      %c0_i32_9 = arith.constant 0 : i32
      %30 = vector.broadcast %c0_i32_9 : i32 to vector<16x1xi32>
      %31 = arith.cmpi eq, %29, %30 : vector<16x1xi32>
      %c0_10 = arith.constant 0 : index
      %c0_11 = arith.constant 0 : index
      %c0_12 = arith.constant 0 : index
      %32 = vector.load %arg4[%c0_10, %c0_11, %c0_12] : memref<3x32x32xf32, #tpu.memory_space<vmem>>, vector<1x32x32xf32>
      %33 = vector.shape_cast %32 : vector<1x32x32xf32> to vector<32x32xf32>
      %c0_13 = arith.constant 0 : index
      %c0_14 = arith.constant 0 : index
      %c0_15 = arith.constant 0 : index
      %34 = vector.load %arg5[%c0_13, %c0_14, %c0_15] : memref<3x32x32xf32, #tpu.memory_space<vmem>>, vector<1x32x32xf32>
      %35 = vector.shape_cast %34 : vector<1x32x32xf32> to vector<32x32xf32>
      %c0_16 = arith.constant 0 : index
      %c0_17 = arith.constant 0 : index
      %c0_18 = arith.constant 0 : index
      %36 = vector.load %arg6[%c0_16, %c0_17, %c0_18] : memref<3x1x32xf32, #tpu.memory_space<vmem>>, vector<1x1x32xf32>
      %37 = vector.shape_cast %36 : vector<1x1x32xf32> to vector<1x32xf32>
      %cst = arith.constant dense<0.000000e+00> : vector<16x32xf32>
      %38 = tpu.matmul %3, %33, %cst {dimension_numbers = #tpu.dot_dimension_numbers<[1], [1], [0], [0], [0, 0, 1, 0], [], []>} : vector<16x32xf32>, vector<32x32xf32>, vector<16x32xf32> -> vector<16x32xf32>
      %cst_19 = arith.constant dense<0.000000e+00> : vector<16x32xf32>
      %39 = tpu.matmul %4, %35, %cst_19 {dimension_numbers = #tpu.dot_dimension_numbers<[1], [1], [0], [0], [0, 0, 1, 0], [], []>} : vector<16x32xf32>, vector<32x32xf32>, vector<16x32xf32> -> vector<16x32xf32>
      %40 = arith.addf %38, %39 : vector<16x32xf32>
      %41 = vector.broadcast %37 : vector<1x32xf32> to vector<16x32xf32>
      %42 = arith.addf %40, %41 : vector<16x32xf32>
      %43 = arith.negf %42 : vector<16x32xf32>
      %44 = math.exp %43 : vector<16x32xf32>
      %cst_20 = arith.constant 1.000000e+00 : f32
      %45 = vector.broadcast %cst_20 : f32 to vector<16x32xf32>
      %46 = arith.addf %45, %44 : vector<16x32xf32>
      %47 = arith.divf %45, %46 : vector<16x32xf32>
      %48 = arith.mulf %47, %3 : vector<16x32xf32>
      %49 = vector.broadcast %5 : vector<16x1xf32> to vector<16x32xf32>
      %50 = arith.mulf %48, %49 : vector<16x32xf32>
      %c1_i32 = arith.constant 1 : i32
      %51 = vector.broadcast %c1_i32 : i32 to vector<16x1xi32>
      %52 = arith.cmpi eq, %29, %51 : vector<16x1xi32>
      %c1_21 = arith.constant 1 : index
      %c0_22 = arith.constant 0 : index
      %c0_23 = arith.constant 0 : index
      %53 = vector.load %arg4[%c1_21, %c0_22, %c0_23] : memref<3x32x32xf32, #tpu.memory_space<vmem>>, vector<1x32x32xf32>
      %54 = vector.shape_cast %53 : vector<1x32x32xf32> to vector<32x32xf32>
      %c1_24 = arith.constant 1 : index
      %c0_25 = arith.constant 0 : index
      %c0_26 = arith.constant 0 : index
      %55 = vector.load %arg5[%c1_24, %c0_25, %c0_26] : memref<3x32x32xf32, #tpu.memory_space<vmem>>, vector<1x32x32xf32>
      %56 = vector.shape_cast %55 : vector<1x32x32xf32> to vector<32x32xf32>
      %c1_27 = arith.constant 1 : index
      %c0_28 = arith.constant 0 : index
      %c0_29 = arith.constant 0 : index
      %57 = vector.load %arg6[%c1_27, %c0_28, %c0_29] : memref<3x1x32xf32, #tpu.memory_space<vmem>>, vector<1x1x32xf32>
      %58 = vector.shape_cast %57 : vector<1x1x32xf32> to vector<1x32xf32>
      %cst_30 = arith.constant dense<0.000000e+00> : vector<16x32xf32>
      %59 = tpu.matmul %3, %54, %cst_30 {dimension_numbers = #tpu.dot_dimension_numbers<[1], [1], [0], [0], [0, 0, 1, 0], [], []>} : vector<16x32xf32>, vector<32x32xf32>, vector<16x32xf32> -> vector<16x32xf32>
      %cst_31 = arith.constant dense<0.000000e+00> : vector<16x32xf32>
      %60 = tpu.matmul %4, %56, %cst_31 {dimension_numbers = #tpu.dot_dimension_numbers<[1], [1], [0], [0], [0, 0, 1, 0], [], []>} : vector<16x32xf32>, vector<32x32xf32>, vector<16x32xf32> -> vector<16x32xf32>
      %61 = arith.addf %59, %60 : vector<16x32xf32>
      %62 = vector.broadcast %58 : vector<1x32xf32> to vector<16x32xf32>
      %63 = arith.addf %61, %62 : vector<16x32xf32>
      %64 = arith.negf %63 : vector<16x32xf32>
      %65 = math.exp %64 : vector<16x32xf32>
      %cst_32 = arith.constant 1.000000e+00 : f32
      %66 = vector.broadcast %cst_32 : f32 to vector<16x32xf32>
      %67 = arith.addf %66, %65 : vector<16x32xf32>
      %68 = arith.divf %66, %67 : vector<16x32xf32>
      %69 = arith.mulf %68, %3 : vector<16x32xf32>
      %70 = vector.broadcast %5 : vector<16x1xf32> to vector<16x32xf32>
      %71 = arith.mulf %69, %70 : vector<16x32xf32>
      %c2 = arith.constant 2 : index
      %c0_33 = arith.constant 0 : index
      %c0_34 = arith.constant 0 : index
      %72 = vector.load %arg4[%c2, %c0_33, %c0_34] : memref<3x32x32xf32, #tpu.memory_space<vmem>>, vector<1x32x32xf32>
      %73 = vector.shape_cast %72 : vector<1x32x32xf32> to vector<32x32xf32>
      %c2_35 = arith.constant 2 : index
      %c0_36 = arith.constant 0 : index
      %c0_37 = arith.constant 0 : index
      %74 = vector.load %arg5[%c2_35, %c0_36, %c0_37] : memref<3x32x32xf32, #tpu.memory_space<vmem>>, vector<1x32x32xf32>
      %75 = vector.shape_cast %74 : vector<1x32x32xf32> to vector<32x32xf32>
      %c2_38 = arith.constant 2 : index
      %c0_39 = arith.constant 0 : index
      %c0_40 = arith.constant 0 : index
      %76 = vector.load %arg6[%c2_38, %c0_39, %c0_40] : memref<3x1x32xf32, #tpu.memory_space<vmem>>, vector<1x1x32xf32>
      %77 = vector.shape_cast %76 : vector<1x1x32xf32> to vector<1x32xf32>
      %cst_41 = arith.constant dense<0.000000e+00> : vector<16x32xf32>
      %78 = tpu.matmul %3, %73, %cst_41 {dimension_numbers = #tpu.dot_dimension_numbers<[1], [1], [0], [0], [0, 0, 1, 0], [], []>} : vector<16x32xf32>, vector<32x32xf32>, vector<16x32xf32> -> vector<16x32xf32>
      %cst_42 = arith.constant dense<0.000000e+00> : vector<16x32xf32>
      %79 = tpu.matmul %4, %75, %cst_42 {dimension_numbers = #tpu.dot_dimension_numbers<[1], [1], [0], [0], [0, 0, 1, 0], [], []>} : vector<16x32xf32>, vector<32x32xf32>, vector<16x32xf32> -> vector<16x32xf32>
      %80 = arith.addf %78, %79 : vector<16x32xf32>
      %81 = vector.broadcast %77 : vector<1x32xf32> to vector<16x32xf32>
      %82 = arith.addf %80, %81 : vector<16x32xf32>
      %83 = arith.negf %82 : vector<16x32xf32>
      %84 = math.exp %83 : vector<16x32xf32>
      %cst_43 = arith.constant 1.000000e+00 : f32
      %85 = vector.broadcast %cst_43 : f32 to vector<16x32xf32>
      %86 = arith.addf %85, %84 : vector<16x32xf32>
      %87 = arith.divf %85, %86 : vector<16x32xf32>
      %88 = arith.mulf %87, %3 : vector<16x32xf32>
      %89 = vector.broadcast %5 : vector<16x1xf32> to vector<16x32xf32>
      %90 = arith.mulf %88, %89 : vector<16x32xf32>
      %91 = vector.shape_cast %52 : vector<16x1xi1> to vector<16x1xi1>
      %92 = vector.broadcast %91 : vector<16x1xi1> to vector<16x32xi1>
      %93 = arith.select %92, %71, %90 : vector<16x32xi1>, vector<16x32xf32>
      %94 = vector.shape_cast %31 : vector<16x1xi1> to vector<16x1xi1>
      %95 = vector.broadcast %94 : vector<16x1xi1> to vector<16x32xi1>
      %96 = arith.select %95, %50, %93 : vector<16x32xi1>, vector<16x32xf32>
      %c0_44 = arith.constant 0 : index
      %c0_45 = arith.constant 0 : index
      %97 = vector.load %arg8[%c0_44, %c0_45] : memref<16x32xf32, #tpu.memory_space<vmem>>, vector<16x32xf32>
      tpu.vector_store %arg8[%c0_44, %c0_45], %96 {strides = array<i32>} : memref<16x32xf32, #tpu.memory_space<vmem>>, vector<16x32xf32>,
    } else {
    }
    return
  }
  func.func @transform_0(%arg0: i32, %arg1: memref<2xi32, #tpu.memory_space<smem>>) -> (i32, i32) {
    %c0_i32 = arith.constant 0 : i32
    %c0_i32_0 = arith.constant 0 : i32
    return %arg0, %c0_i32 : i32, i32
  }
  func.func @transform_1(%arg0: i32, %arg1: memref<2xi32, #tpu.memory_space<smem>>) -> (i32, i32) {
    %c0_i32 = arith.constant 0 : i32
    %c0_i32_0 = arith.constant 0 : i32
    return %arg0, %c0_i32 : i32, i32
  }
  func.func @transform_2(%arg0: i32, %arg1: memref<2xi32, #tpu.memory_space<smem>>) -> (i32, i32, i32) {
    %c0_i32 = arith.constant 0 : i32
    %c0_i32_0 = arith.constant 0 : i32
    %c0_i32_1 = arith.constant 0 : i32
    %c0_i32_2 = arith.constant 0 : i32
    return %c0_i32, %c0_i32_0, %c0_i32_1 : i32, i32, i32
  }
  func.func @transform_3(%arg0: i32, %arg1: memref<2xi32, #tpu.memory_space<smem>>) -> (i32, i32, i32) {
    %c0_i32 = arith.constant 0 : i32
    %c0_i32_0 = arith.constant 0 : i32
    %c0_i32_1 = arith.constant 0 : i32
    %c0_i32_2 = arith.constant 0 : i32
    return %c0_i32, %c0_i32_0, %c0_i32_1 : i32, i32, i32
  }
  func.func @transform_4(%arg0: i32, %arg1: memref<2xi32, #tpu.memory_space<smem>>) -> (i32, i32, i32) {
    %c0_i32 = arith.constant 0 : i32
    %c0_i32_0 = arith.constant 0 : i32
    %c0_i32_1 = arith.constant 0 : i32
    %c0_i32_2 = arith.constant 0 : i32
    return %c0_i32, %c0_i32_0, %c0_i32_1 : i32, i32, i32
  }
  func.func @transform_5(%arg0: i32, %arg1: memref<2xi32, #tpu.memory_space<smem>>) -> (i32, i32) {
    %c0_i32 = arith.constant 0 : i32
    %c0_i32_0 = arith.constant 0 : i32
    return %arg0, %c0_i32 : i32, i32
  }
  func.func @transform_6(%arg0: i32, %arg1: memref<2xi32, #tpu.memory_space<smem>>) -> (i32, i32) {
    %c0_i32 = arith.constant 0 : i32
    %c0_i32_0 = arith.constant 0 : i32
    return %arg0, %c0_i32 : i32, i32
  }
}

</mosaic_0001>

<llo_original>
// kernel: f_dense_op_comp_forward.1
$region0: #{f_dense_op_comp_forward.1}
  #allocation0 [shape = 'u32[]', space=smem, size = 0x4, offset = 0x4, fixed_abs, tag = 'smem constant byte address 0x4 - core index']
  #allocation1 [shape = 'u32[72,128]{1,0:T(1,128)}', space=vmem, size = 0x9000, scoped, tag = 'internal scratch']
  #allocation2 [shape = 's32[1]{0}', space=sflag, size = 0x4, scoped, tag = 'scoped memory for f_dense_op_comp_forward.1']
  #allocation3 [shape = 'u8[512]{0}', space=smem, size = 0x200, scoped, tag = 'prefetched SMEM operand 0']
  %s0 = inlined_call_operand.vmem [shape: s32[2], index: 0, kind: input, shape index: {}]
  %s1 = inlined_call_operand.vmem [shape: f32[72,32], index: 1, kind: input, shape index: {}]
  %s2 = inlined_call_operand.vmem [shape: f32[72,32], index: 2, kind: input, shape index: {}]
  %s3 = inlined_call_operand.vmem [shape: f32[3,32,32], index: 3, kind: input, shape index: {}]
  %s4 = inlined_call_operand.vmem [shape: f32[3,32,32], index: 4, kind: input, shape index: {}]
  %s5 = inlined_call_operand.vmem [shape: f32[3,1,32], index: 5, kind: input, shape index: {}]
  %s6 = inlined_call_operand.vmem [shape: f32[72,1], index: 6, kind: input, shape index: {}]
  %s7 = inlined_call_operand.vmem [shape: f32[72,32], index: 7, kind: output, shape index: {}]
  %s8 = sld [smem:[#allocation0]]
  $region113: #{f_dense_op_comp_forward.1} parent=0
    _
  %s10 = ssub.s32 1, %s8
  %s11 = scalar_select 0, %s10, %s8
  %s13 = sshll.u32 %s0, 4
  %s14 = int_to_ptr.vmem [resolvable:$true] %s13
  %16 = dma.vmem_to_smem %s14, 16, [#allocation3], [#allocation2]
  %18 = dma.done [#allocation2], 16
  %19 = sfence
  $region1: #{f_dense_op_comp_forward.1} parent=0
    #allocation4 [shape = 'u8[16384]{0}', space=vmem, size = 0x4000, scoped, tag = 'output window, operand 0']
    loop: start=0, step=1, limit=7
    $region2: #{f_dense_op_comp_forward.1} parent=1 // loop_pre_header
      _
    $region3: #{f_dense_op_comp_forward.1} parent=1 // loop_header
      %s21 = sphi 0, %s25
      %p22 = scmp.ge.s32.totalorder %s21, 7
      %s31 = sphi 0, %s33
      %s34 = sphi 0, %s31
      %s35 = sphi 0, %s34
      %s51 = sphi 0, %s35
      %s57 = sphi 0, %s59
      %s60 = sphi 0, %s57
      %s61 = sphi 0, %s60
      %s77 = sphi 0, %s61
      %s81 = sphi 0, %s81
      %s83 = sphi 0, %s81
      %s84 = sphi 0, %s83
      %s98 = sphi 0, %s84
      %s102 = sphi 0, %s102
      %s104 = sphi 0, %s102
      %s105 = sphi 0, %s104
      %s119 = sphi 0, %s105
      %s123 = sphi 0, %s123
      %s125 = sphi 0, %s123
      %s126 = sphi 0, %s125
      %s140 = sphi 0, %s126
      %s146 = sphi 0, %s148
      %s149 = sphi 0, %s146
      %s150 = sphi 0, %s149
      %s166 = sphi 0, %s150
      %s172 = sphi 0, %s174
      %s175 = sphi 0, %s172
      %s176 = sphi 0, %s175
      %s192 = sphi 0, %s176
    $region4: #{f_dense_op_comp_forward.1} parent=1 // loop_header_branch
      %24 = sbr.rel (%p22) target = $region8
    $region5: #{f_dense_op_comp_forward.1} parent=1 // loop_body
      %s26 = ssub.s32 %s21, 1
      %s27 = ssub.s32 %s21, 2
      %s28 = sadd.s32 %s21, 1
      %s29 = ssub.s32 %s21, %s28
      %p30 = scmp.eq.s32.totalorder %s29, 0
      %s32 = sadd.s32 %s31, 1
      %s33 = scalar_select %p30, %s31, %s32
      %p36 = pneg %p30
      %p37 = scmp.eq.s32.totalorder %s21, 4
      %p38 = por %p36, %p37
      %p39 = scmp.ne.s32.totalorder %s31, %s34
      %p40 = scmp.eq.s32.totalorder %s21, 0
      %p41 = por %p39, %p40
      %p42 = scmp.ne.s32.totalorder %s31, %s34
      %p43 = scmp.eq.s32.totalorder %s26, 4
      %p44 = por %p42, %p43
      %p45 = scmp.ne.s32.totalorder %s34, %s35
      %p46 = scmp.eq.s32.totalorder %s26, 0
      %p47 = por %p45, %p46
      %p48 = scmp.ne.s32.totalorder %s34, %s35
      %p49 = scmp.eq.s32.totalorder %s27, 4
      %p50 = por %p48, %p49
      %p52 = scmp.ne.s32.totalorder %s35, %s51
      %p53 = scmp.eq.s32.totalorder %s27, 0
      %p54 = por %p52, %p53
      %s55 = ssub.s32 %s21, %s28
      %p56 = scmp.eq.s32.totalorder %s55, 0
      %s58 = sadd.s32 %s57, 1
      %s59 = scalar_select %p56, %s57, %s58
      %p62 = pneg %p56
      %p63 = scmp.eq.s32.totalorder %s21, 4
      %p64 = por %p62, %p63
      %p65 = scmp.ne.s32.totalorder %s57, %s60
      %p66 = scmp.eq.s32.totalorder %s21, 0
      %p67 = por %p65, %p66
      %p68 = scmp.ne.s32.totalorder %s57, %s60
      %p69 = scmp.eq.s32.totalorder %s26, 4
      %p70 = por %p68, %p69
      %p71 = scmp.ne.s32.totalorder %s60, %s61
      %p72 = scmp.eq.s32.totalorder %s26, 0
      %p73 = por %p71, %p72
      %p74 = scmp.ne.s32.totalorder %s60, %s61
      %p75 = scmp.eq.s32.totalorder %s27, 4
      %p76 = por %p74, %p75
      %p78 = scmp.ne.s32.totalorder %s61, %s77
      %p79 = scmp.eq.s32.totalorder %s27, 0
      %p80 = por %p78, %p79
      %s82 = sadd.s32 %s81, 1
      %p85 = scmp.eq.s32.totalorder %s21, 4
      %p86 = scmp.ne.s32.totalorder %s81, %s83
      %p87 = scmp.eq.s32.totalorder %s21, 0
      %p88 = por %p86, %p87
      %p89 = scmp.ne.s32.totalorder %s81, %s83
      %p90 = scmp.eq.s32.totalorder %s26, 4
      %p91 = por %p89, %p90
      %p92 = scmp.ne.s32.totalorder %s83, %s84
      %p93 = scmp.eq.s32.totalorder %s26, 0
      %p94 = por %p92, %p93
      %p95 = scmp.ne.s32.totalorder %s83, %s84
      %p96 = scmp.eq.s32.totalorder %s27, 4
      %p97 = por %p95, %p96
      %p99 = scmp.ne.s32.totalorder %s84, %s98
      %p100 = scmp.eq.s32.totalorder %s27, 0
      %p101 = por %p99, %p100
      %s103 = sadd.s32 %s102, 1
      %p106 = scmp.eq.s32.totalorder %s21, 4
      %p107 = scmp.ne.s32.totalorder %s102, %s104
      %p108 = scmp.eq.s32.totalorder %s21, 0
      %p109 = por %p107, %p108
      %p110 = scmp.ne.s32.totalorder %s102, %s104
      %p111 = scmp.eq.s32.totalorder %s26, 4
      %p112 = por %p110, %p111
      %p113 = scmp.ne.s32.totalorder %s104, %s105
      %p114 = scmp.eq.s32.totalorder %s26, 0
      %p115 = por %p113, %p114
      %p116 = scmp.ne.s32.totalorder %s104, %s105
      %p117 = scmp.eq.s32.totalorder %s27, 4
      %p118 = por %p116, %p117
      %p120 = scmp.ne.s32.totalorder %s105, %s119
      %p121 = scmp.eq.s32.totalorder %s27, 0
      %p122 = por %p120, %p121
      %s124 = sadd.s32 %s123, 1
      %p127 = scmp.eq.s32.totalorder %s21, 4
      %p128 = scmp.ne.s32.totalorder %s123, %s125
      %p129 = scmp.eq.s32.totalorder %s21, 0
      %p130 = por %p128, %p129
      %p131 = scmp.ne.s32.totalorder %s123, %s125
      %p132 = scmp.eq.s32.totalorder %s26, 4
      %p133 = por %p131, %p132
      %p134 = scmp.ne.s32.totalorder %s125, %s126
      %p135 = scmp.eq.s32.totalorder %s26, 0
      %p136 = por %p134, %p135
      %p137 = scmp.ne.s32.totalorder %s125, %s126
      %p138 = scmp.eq.s32.totalorder %s27, 4
      %p139 = por %p137, %p138
      %p141 = scmp.ne.s32.totalorder %s126, %s140
      %p142 = scmp.eq.s32.totalorder %s27, 0
      %p143 = por %p141, %p142
      %s144 = ssub.s32 %s21, %s28
      %p145 = scmp.eq.s32.totalorder %s144, 0
      %s147 = sadd.s32 %s146, 1
      %s148 = scalar_select %p145, %s146, %s147
      %p151 = pneg %p145
      %p152 = scmp.eq.s32.totalorder %s21, 4
      %p153 = por %p151, %p152
      %p154 = scmp.ne.s32.totalorder %s146, %s149
      %p155 = scmp.eq.s32.totalorder %s21, 0
      %p156 = por %p154, %p155
      %p157 = scmp.ne.s32.totalorder %s146, %s149
      %p158 = scmp.eq.s32.totalorder %s26, 4
      %p159 = por %p157, %p158
      %p160 = scmp.ne.s32.totalorder %s149, %s150
      %p161 = scmp.eq.s32.totalorder %s26, 0
      %p162 = por %p160, %p161
      %p163 = scmp.ne.s32.totalorder %s149, %s150
      %p164 = scmp.eq.s32.totalorder %s27, 4
      %p165 = por %p163, %p164
      %p167 = scmp.ne.s32.totalorder %s150, %s166
      %p168 = scmp.eq.s32.totalorder %s27, 0
      %p169 = por %p167, %p168
      %s170 = ssub.s32 %s21, %s28
      %p171 = scmp.eq.s32.totalorder %s170, 0
      %s173 = sadd.s32 %s172, 1
      %s174 = scalar_select %p171, %s172, %s173
      %p177 = pneg %p171
      %p178 = scmp.eq.s32.totalorder %s21, 4
      %p179 = por %p177, %p178
      %p180 = scmp.ne.s32.totalorder %s172, %s175
      %p181 = scmp.eq.s32.totalorder %s21, 0
      %p182 = por %p180, %p181
      %p183 = scmp.ne.s32.totalorder %s172, %s175
      %p184 = scmp.eq.s32.totalorder %s26, 4
      %p185 = por %p183, %p184
      %p186 = scmp.ne.s32.totalorder %s175, %s176
      %p187 = scmp.eq.s32.totalorder %s26, 0
      %p188 = por %p186, %p187
      %p189 = scmp.ne.s32.totalorder %s175, %s176
      %p190 = scmp.eq.s32.totalorder %s27, 4
      %p191 = por %p189, %p190
      %p193 = scmp.ne.s32.totalorder %s176, %s192
      %p194 = scmp.eq.s32.totalorder %s27, 0
      %p195 = por %p193, %p194
      %p196 = scmp.le.s32.totalorder 1, %s21
      %p197 = scmp.lt.s32.totalorder %s21, 6
      %p198 = pnand %p196, %p197
      %p199 = pneg %p198
      // Predicated region
      $region9: #{f_dense_op_comp_forward.1} parent=5 // pred_check
        _
      $region10: #{f_dense_op_comp_forward.1} parent=5 // pred_check_branch
        %201 = sbr.rel (%p198) target = $region12
      $region11: #{f_dense_op_comp_forward.1} parent=5 // pred_region
        %s202 = ssub.s32 %s21, 1
        // Predicated region
        $region13: #{f_dense_op_comp_forward.1} parent=11 // pred_check
          %p203 = pneg %p94
        $region14: #{f_dense_op_comp_forward.1} parent=11 // pred_check_branch
          %205 = sbr.rel (%p203) target = $region16
        $region15: #{f_dense_op_comp_forward.1} parent=11 // pred_region
          _
        $region16: #{f_dense_op_comp_forward.1} parent=11 // pred_fallthru
          _
        // Predicated region
        $region17: #{f_dense_op_comp_forward.1} parent=11 // pred_check
          %p206 = pneg %p115
        $region18: #{f_dense_op_comp_forward.1} parent=11 // pred_check_branch
          %208 = sbr.rel (%p206) target = $region20
        $region19: #{f_dense_op_comp_forward.1} parent=11 // pred_region
          _
        $region20: #{f_dense_op_comp_forward.1} parent=11 // pred_fallthru
          _
        // Predicated region
        $region21: #{f_dense_op_comp_forward.1} parent=11 // pred_check
          %p209 = pneg %p136
        $region22: #{f_dense_op_comp_forward.1} parent=11 // pred_check_branch
          %211 = sbr.rel (%p209) target = $region24
        $region23: #{f_dense_op_comp_forward.1} parent=11 // pred_region
          _
        $region24: #{f_dense_op_comp_forward.1} parent=11 // pred_fallthru
          _
      $region12: #{f_dense_op_comp_forward.1} parent=5 // pred_fallthru
        _
      %p212 = scmp.lt.s32.totalorder %s21, 5
      // Predicated region
      $region25: #{f_dense_op_comp_forward.1} parent=5 // pred_check
        %p213 = pneg %p212
      $region26: #{f_dense_op_comp_forward.1} parent=5 // pred_check_branch
        %215 = sbr.rel (%p213) target = $region28
      $region27: #{f_dense_op_comp_forward.1} parent=5 // pred_region
        // Predicated region
        $region29: #{f_dense_op_comp_forward.1} parent=27 // pred_check
          %p216 = pneg %p41
        $region30: #{f_dense_op_comp_forward.1} parent=27 // pred_check_branch
          %218 = sbr.rel (%p216) target = $region32
        $region31: #{f_dense_op_comp_forward.1} parent=27 // pred_region
          %s219 = smul.u32 2, %s21
          %s220 = ssub.s32 9, %s219
          %p221 = scmp.lt.s32.totalorder %s220, 2
          %s222 = scalar_select %p221, %s220, 2
          %s223 = smul.u32 8, %s222
          %p224 = scmp.lt.s32.totalorder %s219, 8
          %s225 = scalar_select %p224, %s219, 8
          %s226 = smul.addr %s225, 8
          %s227 = scalar_lea.vmem %s1, %s226
          %s228 = smul.u32 2, %s21
          %s229 = ssub.s32 9, %s228
          %p230 = scmp.lt.s32.totalorder %s229, 2
          %s231 = scalar_select %p230, %s229, 2
          %s232 = smul.u32 8, %s231
        $region32: #{f_dense_op_comp_forward.1} parent=27 // pred_fallthru
          _
        // Predicated region
        $region33: #{f_dense_op_comp_forward.1} parent=27 // pred_check
          %p233 = pneg %p67
        $region34: #{f_dense_op_comp_forward.1} parent=27 // pred_check_branch
          %235 = sbr.rel (%p233) target = $region36
        $region35: #{f_dense_op_comp_forward.1} parent=27 // pred_region
          %s236 = smul.u32 2, %s21
          %s237 = ssub.s32 9, %s236
          %p238 = scmp.lt.s32.totalorder %s237, 2
          %s239 = scalar_select %p238, %s237, 2
          %s240 = smul.u32 8, %s239
          %p241 = scmp.lt.s32.totalorder %s236, 8
          %s242 = scalar_select %p241, %s236, 8
          %s243 = smul.addr %s242, 8
          %s244 = scalar_lea.vmem %s2, %s243
          %s245 = smul.u32 2, %s21
          %s246 = ssub.s32 9, %s245
          %p247 = scmp.lt.s32.totalorder %s246, 2
          %s248 = scalar_select %p247, %s246, 2
          %s249 = smul.u32 8, %s248
        $region36: #{f_dense_op_comp_forward.1} parent=27 // pred_fallthru
          _
        // Predicated region
        $region37: #{f_dense_op_comp_forward.1} parent=27 // pred_check
          %p250 = pneg %p156
        $region38: #{f_dense_op_comp_forward.1} parent=27 // pred_check_branch
          %252 = sbr.rel (%p250) target = $region40
        $region39: #{f_dense_op_comp_forward.1} parent=27 // pred_region
          %s253 = smul.u32 2, %s21
          %s254 = ssub.s32 9, %s253
          %p255 = scmp.lt.s32.totalorder %s254, 2
          %s256 = scalar_select %p255, %s254, 2
          %s257 = smul.u32 8, %s256
          %p258 = scmp.lt.s32.totalorder %s253, 8
          %s259 = scalar_select %p258, %s253, 8
          %s260 = smul.addr %s259, 8
          %s261 = scalar_lea.vmem %s6, %s260
          %s262 = smul.u32 2, %s21
          %s263 = ssub.s32 9, %s262
          %p264 = scmp.lt.s32.totalorder %s263, 2
          %s265 = scalar_select %p264, %s263, 2
          %s266 = smul.u32 8, %s265
        $region40: #{f_dense_op_comp_forward.1} parent=27 // pred_fallthru
          _
      $region28: #{f_dense_op_comp_forward.1} parent=5 // pred_fallthru
        _
      %p267 = scmp.le.s32.totalorder 1, %s21
      %p268 = scmp.lt.s32.totalorder %s21, 6
      %p269 = pnand %p267, %p268
      %p270 = pneg %p269
      // Predicated region
      $region41: #{f_dense_op_comp_forward.1} parent=5 // pred_check
        _
      $region42: #{f_dense_op_comp_forward.1} parent=5 // pred_check_branch
        %272 = sbr.rel (%p269) target = $region44
      $region43: #{f_dense_op_comp_forward.1} parent=5 // pred_region
        %s273 = ssub.s32 %s21, 1
        %s274 = smul.u32 2, %s26
        %s275 = ssub.s32 9, %s274
        %p276 = scmp.lt.s32.totalorder %s275, 2
        %s277 = scalar_select %p276, %s275, 2
        %s278 = smul.u32 8, %s277
        %p279 = scmp.lt.s32.totalorder %s274, 8
        %s280 = scalar_select %p279, %s274, 8
        %s281 = smul.addr %s280, 8
        %s282 = scalar_lea.vmem %s1, %s281
        %p283 = pneg %p47
        %p284 = pneg %p44
        %s285 = smul.u32 2, %s26
        %s286 = ssub.s32 9, %s285
        %p287 = scmp.lt.s32.totalorder %s286, 2
        %s288 = scalar_select %p287, %s286, 2
        %s289 = smul.u32 8, %s288
        %p290 = scmp.lt.s32.totalorder %s285, 8
        %s291 = scalar_select %p290, %s285, 8
        %s292 = smul.addr %s291, 8
        %s293 = scalar_lea.vmem %s2, %s292
        %p294 = pneg %p73
        %p295 = pneg %p70
        %p296 = pneg %p94
        %p297 = pneg %p91
        %p298 = pneg %p115
        %p299 = pneg %p112
        %p300 = pneg %p136
        %p301 = pneg %p133
        %s302 = smul.u32 2, %s26
        %s303 = ssub.s32 9, %s302
        %p304 = scmp.lt.s32.totalorder %s303, 2
        %s305 = scalar_select %p304, %s303, 2
        %s306 = smul.u32 8, %s305
        %p307 = scmp.lt.s32.totalorder %s302, 8
        %s308 = scalar_select %p307, %s302, 8
        %s309 = smul.addr %s308, 8
        %s310 = scalar_lea.vmem %s6, %s309
        %p311 = pneg %p162
        %p312 = pneg %p159
        %p313 = pneg %p188
        %p314 = pneg %p185
        %s315 = sand.u32 %s175, 1
        %s316 = sand.u32 %s175, 1
        %s317 = smul.addr %s316, 16
        %s318 = scalar_lea.vmem [#allocation4], %s317
        %s319 = smul.u32 2, %s26
        %s320 = ssub.s32 9, %s319
        %p321 = scmp.lt.s32.totalorder %s320, 2
        %s322 = scalar_select %p321, %s320, 2
        %s323 = smul.u32 8, %s322
        %p324 = scmp.lt.s32.totalorder %s319, 8
        %s325 = scalar_select %p324, %s319, 8
        %s326 = smul.addr %s325, 8
        %s327 = scalar_lea.vmem %s1, %s326
        %s328 = smul.u32 2, %s26
        %s329 = ssub.s32 9, %s328
        %p330 = scmp.lt.s32.totalorder %s329, 2
        %s331 = scalar_select %p330, %s329, 2
        %s332 = smul.u32 8, %s331
        %s333 = smul.u32 2, %s26
        %s334 = ssub.s32 9, %s333
        %p335 = scmp.lt.s32.totalorder %s334, 2
        %s336 = scalar_select %p335, %s334, 2
        %s337 = smul.u32 8, %s336
        %p338 = scmp.lt.s32.totalorder %s333, 8
        %s339 = scalar_select %p338, %s333, 8
        %s340 = smul.addr %s339, 8
        %s341 = scalar_lea.vmem %s2, %s340
        %s342 = smul.u32 2, %s26
        %s343 = ssub.s32 9, %s342
        %p344 = scmp.lt.s32.totalorder %s343, 2
        %s345 = scalar_select %p344, %s343, 2
        %s346 = smul.u32 8, %s345
        %s347 = smul.u32 2, %s26
        %s348 = ssub.s32 9, %s347
        %p349 = scmp.lt.s32.totalorder %s348, 2
        %s350 = scalar_select %p349, %s348, 2
        %s351 = smul.u32 8, %s350
        %p352 = scmp.lt.s32.totalorder %s347, 8
        %s353 = scalar_select %p352, %s347, 8
        %s354 = smul.addr %s353, 8
        %s355 = scalar_lea.vmem %s6, %s354
        %s356 = smul.u32 2, %s26
        %s357 = ssub.s32 9, %s356
        %p358 = scmp.lt.s32.totalorder %s357, 2
        %s359 = scalar_select %p358, %s357, 2
        %s360 = smul.u32 8, %s359
        %s361 = smul.u32 2, %s26
        %s362 = ssub.s32 9, %s361
        %p363 = scmp.lt.s32.totalorder %s362, 2
        %s364 = scalar_select %p363, %s362, 2
        %s365 = smul.u32 8, %s364
        %s366 = smul.u32 %s26, 16
        %s367 = sld [smem:[#allocation3]]
        %s368 = sld [smem:[#allocation3 + $0x1]]
        %v369 = vld [vmem:[%s327] sm:$0xff]
        %v370 = vld [vmem:[%s327 + $0x8] sm:$0xff]
        %v371 = vld [vmem:[%s341] sm:$0xff]
        %v372 = vld [vmem:[%s341 + $0x8] sm:$0xff]
        %v373 = vld [vmem:[%s355] sm:$0xff]
        %v374 = vld [vmem:[%s355 + $0x8] sm:$0xff]
        %p375 = scmp.gt.s32.totalorder %s367, %s366
        %s376 = sadd.s32 %s366, 16
        %p377 = scmp.lt.s32.totalorder %s367, %s376
        %p378 = pnand %p375, %p377
        %p379 = pneg %p378
        %p380 = scmp.gt.s32.totalorder %s368, %s366
        %p381 = scmp.lt.s32.totalorder %s368, %s376
        %p382 = pnand %p380, %p381
        %p383 = pneg %p382
        %p384 = por %p379, %p383
        // Predicated region
        $region45: #{f_dense_op_comp_forward.1} parent=43 // pred_check
          %p385 = pneg %p384
        $region46: #{f_dense_op_comp_forward.1} parent=43 // pred_check_branch
          %387 = sbr.rel (%p385) target = $region48
        $region47: #{f_dense_op_comp_forward.1} parent=43 // pred_region
          %v388 = vlaneseq
          %v389 = vshrl.u32 %v388, 7
          %v390 = vadd.s32 %v389, 8
          %v391 = vstv %s366
          %v392 = vadd.s32 %v391, %v389
          %v393 = vadd.s32 %v391, %v390
          %v394 = vstv %s367
          %vm395 = vcmp.ge.s32.totalorder %v392, %v394
          %vm396 = vcmp.ge.s32.totalorder %v393, %v394
          %v397 = vsel %vm395, 1, 0
          %v398 = vsel %vm396, 1, 0
          %v399 = vstv %s368
          %vm400 = vcmp.ge.s32.totalorder %v392, %v399
          %vm401 = vcmp.ge.s32.totalorder %v393, %v399
          %v402 = vsel %vm400, 1, 0
          %v403 = vsel %vm401, 1, 0
          %v404 = vadd.s32 %v397, %v402
          %v405 = vadd.s32 %v398, %v403
          %vm406 = vcmp.eq.s32.totalorder %v404, 0
          %vm407 = vcmp.eq.s32.totalorder %v405, 0
          %v408 = vld [vmem:[%s3] sm:$0xff]
          %v409 = vld [vmem:[%s3 + $0x8] sm:$0xff]
          %v410 = vld [vmem:[%s3 + $0x10] sm:$0xff]
          %v411 = vld [vmem:[%s3 + $0x18] sm:$0xff]
          %v412 = vld [vmem:[%s4] sm:$0xff]
          %v413 = vld [vmem:[%s4 + $0x8] sm:$0xff]
          %v414 = vld [vmem:[%s4 + $0x10] sm:$0xff]
          %v415 = vld [vmem:[%s4 + $0x18] sm:$0xff]
          %v416 = vld [vmem:[%s5] sm:$0x1]
          %vm417 = vcmask 261120
          %v419 = vsel %vm417, %v371, 0
          %v422 = vsel %vm417, %v372, 0
          %v425 = vsel %vm417, %v412, 0
          %v428 = vsel %vm417, %v413, 0
          %v431 = vsel %vm417, %v414, 0
          %v434 = vsel %vm417, %v415, 0
          %436 = vmatpush.xpose.msra.mxu0 0.0
          %437 = vmatpush.xpose.msra.mxu0 0.0
          %438 = vmatpush.xpose.msra.mxu0 0.0
          %439 = vmatpush.xpose.msra.mxu0 0.0
          %440 = vmatpush.xpose.msra.mxu0 0.0
          %441 = vmatpush.xpose.msra.mxu0 0.0
          %442 = vmatpush.xpose.msra.mxu0 0.0
          %443 = vmatpush.xpose.msra.mxu0 0.0
          %444 = vmatpush.xpose.msra.mxu0 0.0
          %445 = vmatpush.xpose.msra.mxu0 0.0
          %446 = vmatpush.xpose.msra.mxu0 0.0
          %447 = vmatpush.xpose.msra.mxu0 0.0
          %448 = vmatpush.xpose.msra.mxu0 %v434
          %449 = vmatpush.xpose.msra.mxu0 %v431
          %450 = vmatpush.xpose.msra.mxu0 %v428
          %451 = vmatpush.xpose.msra.mxu0 %v425
          %452 = vmatmul.f32.gmra.mxu0 %v419
          %v453 = vpop.f32.mrf.mxu0
          %v454 = vadd.f32 0.0, %v453
          %455 = vmatmul.f32.gmra.mxu0 %v422
          %v456 = vpop.f32.mrf.mxu0
          %v457 = vadd.f32 0.0, %v456
          %458 = vdwg.mxu0
          %v460 = vsel %vm417, %v369, 0
          %v463 = vsel %vm417, %v370, 0
          %v466 = vsel %vm417, %v408, 0
          %v469 = vsel %vm417, %v409, 0
          %v472 = vsel %vm417, %v410, 0
          %v475 = vsel %vm417, %v411, 0
          %477 = vmatpush.xpose.msra.mxu0 0.0
          %478 = vmatpush.xpose.msra.mxu0 0.0
          %479 = vmatpush.xpose.msra.mxu0 0.0
          %480 = vmatpush.xpose.msra.mxu0 0.0
          %481 = vmatpush.xpose.msra.mxu0 0.0
          %482 = vmatpush.xpose.msra.mxu0 0.0
          %483 = vmatpush.xpose.msra.mxu0 0.0
          %484 = vmatpush.xpose.msra.mxu0 0.0
          %485 = vmatpush.xpose.msra.mxu0 0.0
          %486 = vmatpush.xpose.msra.mxu0 0.0
          %487 = vmatpush.xpose.msra.mxu0 0.0
          %488 = vmatpush.xpose.msra.mxu0 0.0
          %489 = vmatpush.xpose.msra.mxu0 %v475
          %490 = vmatpush.xpose.msra.mxu0 %v472
          %491 = vmatpush.xpose.msra.mxu0 %v469
          %492 = vmatpush.xpose.msra.mxu0 %v466
          %493 = vmatmul.f32.gmra.mxu0 %v460
          %v494 = vpop.f32.mrf.mxu0
          %v495 = vadd.f32 %v454, %v494
          %496 = vmatmul.f32.gmra.mxu0 %v463
          %v497 = vpop.f32.mrf.mxu0
          %v498 = vadd.f32 %v457, %v497
          %499 = vdwg.mxu0
          %v501 = vperm.slane %v416, 0
          %v503 = vadd.f32 %v495, %v501
          %v504 = vadd.f32 %v498, %v501
          %v505 = vxor.u32 %v503, 2147483648
          %v506 = vxor.u32 %v504, 2147483648
          %v507 = vmul.f32 %v505, 1.442695
          %v508 = vpow.pop %v507
          %v509 = vmul.f32 %v506, 1.442695
          %v510 = vpow.pop %v509
          %v511 = vadd.f32 %v508, 1.0
          %v512 = vadd.f32 %v510, 1.0
          %v513 = vrcp.pop %v511
          %v514 = vmul.f32 %v511, %v513
          %v515 = vsub.f32 1.0, %v514
          %v516 = vmul.f32 %v513, %v515
          %v517 = vadd.f32 %v513, %v516
          %vm518 = vweird.f32 %v511
          %vm519 = vweird.f32 %v513
          %vm520 = vmor %vm518, %vm519
          %v521 = vsel %vm520, %v513, %v517
          %v522 = vand.u32 2147483647, %v511
          %vm523 = vcmp.eq.f32.partialorder %v522, 8.507059e+37
          %v524 = vand.u32 %v511, 2147483648
          %v525 = vor.u32 1.1754944e-38, %v524
          %v526 = vsel %vm523, %v525, %v521
          %v527 = vmul.f32 1.0, %v526
          %v528 = vrcp.pop %v512
          %v529 = vmul.f32 %v512, %v528
          %v530 = vsub.f32 1.0, %v529
          %v531 = vmul.f32 %v528, %v530
          %v532 = vadd.f32 %v528, %v531
          %vm533 = vweird.f32 %v512
          %vm534 = vweird.f32 %v528
          %vm535 = vmor %vm533, %vm534
          %v536 = vsel %vm535, %v528, %v532
          %v537 = vand.u32 2147483647, %v512
          %vm538 = vcmp.eq.f32.partialorder %v537, 8.507059e+37
          %v539 = vand.u32 %v512, 2147483648
          %v540 = vor.u32 1.1754944e-38, %v539
          %v541 = vsel %vm538, %v540, %v536
          %v542 = vmul.f32 1.0, %v541
          %v543 = vmul.f32 %v527, %v369
          %v544 = vmul.f32 %v542, %v370
          %546 = vset.pattern.permute.xlu0 0
          %547 = vperm.xlu0 %546, %v373
          %v548 = vpop.permute.xlu0 %547
          %551 = vset.pattern.permute.xlu0 0
          %552 = vperm.xlu0 %551, %v374
          %v553 = vpop.permute.xlu0 %552
          %v555 = vmul.f32 %v543, %v548
          %v556 = vmul.f32 %v544, %v553
          %vm557 = vcmp.eq.s32.totalorder %v404, 1
          %vm558 = vcmp.eq.s32.totalorder %v405, 1
          %s559 = scalar_lea.vmem %s3, 32
          %v560 = vld [vmem:[%s559] sm:$0xff]
          %v561 = vld [vmem:[%s559 + $0x8] sm:$0xff]
          %v562 = vld [vmem:[%s559 + $0x10] sm:$0xff]
          %v563 = vld [vmem:[%s559 + $0x18] sm:$0xff]
          %s564 = scalar_lea.vmem %s4, 32
          %v565 = vld [vmem:[%s564] sm:$0xff]
          %v566 = vld [vmem:[%s564 + $0x8] sm:$0xff]
          %v567 = vld [vmem:[%s564 + $0x10] sm:$0xff]
          %v568 = vld [vmem:[%s564 + $0x18] sm:$0xff]
          %s569 = scalar_lea.vmem %s5, 1
          %v570 = vld [vmem:[%s569] sm:$0x1]
          %v572 = vsel %vm417, %v565, 0
          %v575 = vsel %vm417, %v566, 0
          %v578 = vsel %vm417, %v567, 0
          %v581 = vsel %vm417, %v568, 0
          %583 = vmatpush.xpose.msra.mxu0 0.0
          %584 = vmatpush.xpose.msra.mxu0 0.0
          %585 = vmatpush.xpose.msra.mxu0 0.0
          %586 = vmatpush.xpose.msra.mxu0 0.0
          %587 = vmatpush.xpose.msra.mxu0 0.0
          %588 = vmatpush.xpose.msra.mxu0 0.0
          %589 = vmatpush.xpose.msra.mxu0 0.0
          %590 = vmatpush.xpose.msra.mxu0 0.0
          %591 = vmatpush.xpose.msra.mxu0 0.0
          %592 = vmatpush.xpose.msra.mxu0 0.0
          %593 = vmatpush.xpose.msra.mxu0 0.0
          %594 = vmatpush.xpose.msra.mxu0 0.0
          %595 = vmatpush.xpose.msra.mxu0 %v581
          %596 = vmatpush.xpose.msra.mxu0 %v578
          %597 = vmatpush.xpose.msra.mxu0 %v575
          %598 = vmatpush.xpose.msra.mxu0 %v572
          %599 = vmatmul.f32.gmra.mxu0 %v419
          %v600 = vpop.f32.mrf.mxu0
          %v601 = vadd.f32 0.0, %v600
          %602 = vmatmul.f32.gmra.mxu0 %v422
          %v603 = vpop.f32.mrf.mxu0
          %v604 = vadd.f32 0.0, %v603
          %605 = vdwg.mxu0
          %v607 = vsel %vm417, %v560, 0
          %v610 = vsel %vm417, %v561, 0
          %v613 = vsel %vm417, %v562, 0
          %v616 = vsel %vm417, %v563, 0
          %618 = vmatpush.xpose.msra.mxu0 0.0
          %619 = vmatpush.xpose.msra.mxu0 0.0
          %620 = vmatpush.xpose.msra.mxu0 0.0
          %621 = vmatpush.xpose.msra.mxu0 0.0
          %622 = vmatpush.xpose.msra.mxu0 0.0
          %623 = vmatpush.xpose.msra.mxu0 0.0
          %624 = vmatpush.xpose.msra.mxu0 0.0
          %625 = vmatpush.xpose.msra.mxu0 0.0
          %626 = vmatpush.xpose.msra.mxu0 0.0
          %627 = vmatpush.xpose.msra.mxu0 0.0
          %628 = vmatpush.xpose.msra.mxu0 0.0
          %629 = vmatpush.xpose.msra.mxu0 0.0
          %630 = vmatpush.xpose.msra.mxu0 %v616
          %631 = vmatpush.xpose.msra.mxu0 %v613
          %632 = vmatpush.xpose.msra.mxu0 %v610
          %633 = vmatpush.xpose.msra.mxu0 %v607
          %634 = vmatmul.f32.gmra.mxu0 %v460
          %v635 = vpop.f32.mrf.mxu0
          %v636 = vadd.f32 %v601, %v635
          %637 = vmatmul.f32.gmra.mxu0 %v463
          %v638 = vpop.f32.mrf.mxu0
          %v639 = vadd.f32 %v604, %v638
          %640 = vdwg.mxu0
          %v642 = vperm.slane %v570, 0
          %v644 = vadd.f32 %v636, %v642
          %v645 = vadd.f32 %v639, %v642
          %v646 = vxor.u32 %v644, 2147483648
          %v647 = vxor.u32 %v645, 2147483648
          %v648 = vmul.f32 %v646, 1.442695
          %v649 = vpow.pop %v648
          %v650 = vmul.f32 %v647, 1.442695
          %v651 = vpow.pop %v650
          %v652 = vadd.f32 %v649, 1.0
          %v653 = vadd.f32 %v651, 1.0
          %v654 = vrcp.pop %v652
          %v655 = vmul.f32 %v652, %v654
          %v656 = vsub.f32 1.0, %v655
          %v657 = vmul.f32 %v654, %v656
          %v658 = vadd.f32 %v654, %v657
          %vm659 = vweird.f32 %v652
          %vm660 = vweird.f32 %v654
          %vm661 = vmor %vm659, %vm660
          %v662 = vsel %vm661, %v654, %v658
          %v663 = vand.u32 2147483647, %v652
          %vm664 = vcmp.eq.f32.partialorder %v663, 8.507059e+37
          %v665 = vand.u32 %v652, 2147483648
          %v666 = vor.u32 1.1754944e-38, %v665
          %v667 = vsel %vm664, %v666, %v662
          %v668 = vmul.f32 1.0, %v667
          %v669 = vrcp.pop %v653
          %v670 = vmul.f32 %v653, %v669
          %v671 = vsub.f32 1.0, %v670
          %v672 = vmul.f32 %v669, %v671
          %v673 = vadd.f32 %v669, %v672
          %vm674 = vweird.f32 %v653
          %vm675 = vweird.f32 %v669
          %vm676 = vmor %vm674, %vm675
          %v677 = vsel %vm676, %v669, %v673
          %v678 = vand.u32 2147483647, %v653
          %vm679 = vcmp.eq.f32.partialorder %v678, 8.507059e+37
          %v680 = vand.u32 %v653, 2147483648
          %v681 = vor.u32 1.1754944e-38, %v680
          %v682 = vsel %vm679, %v681, %v677
          %v683 = vmul.f32 1.0, %v682
          %v684 = vmul.f32 %v668, %v369
          %v685 = vmul.f32 %v683, %v370
          %v686 = vmul.f32 %v684, %v548
          %v687 = vmul.f32 %v685, %v553
          %s688 = scalar_lea.vmem %s3, 64
          %v689 = vld [vmem:[%s688] sm:$0xff]
          %v690 = vld [vmem:[%s688 + $0x8] sm:$0xff]
          %v691 = vld [vmem:[%s688 + $0x10] sm:$0xff]
          %v692 = vld [vmem:[%s688 + $0x18] sm:$0xff]
          %s693 = scalar_lea.vmem %s4, 64
          %v694 = vld [vmem:[%s693] sm:$0xff]
          %v695 = vld [vmem:[%s693 + $0x8] sm:$0xff]
          %v696 = vld [vmem:[%s693 + $0x10] sm:$0xff]
          %v697 = vld [vmem:[%s693 + $0x18] sm:$0xff]
          %s698 = scalar_lea.vmem %s5, 2
          %v699 = vld [vmem:[%s698] sm:$0x1]
          %v701 = vsel %vm417, %v694, 0
          %v704 = vsel %vm417, %v695, 0
          %v707 = vsel %vm417, %v696, 0
          %v710 = vsel %vm417, %v697, 0
          %712 = vmatpush.xpose.msra.mxu0 0.0
          %713 = vmatpush.xpose.msra.mxu0 0.0
          %714 = vmatpush.xpose.msra.mxu0 0.0
          %715 = vmatpush.xpose.msra.mxu0 0.0
          %716 = vmatpush.xpose.msra.mxu0 0.0
          %717 = vmatpush.xpose.msra.mxu0 0.0
          %718 = vmatpush.xpose.msra.mxu0 0.0
          %719 = vmatpush.xpose.msra.mxu0 0.0
          %720 = vmatpush.xpose.msra.mxu0 0.0
          %721 = vmatpush.xpose.msra.mxu0 0.0
          %722 = vmatpush.xpose.msra.mxu0 0.0
          %723 = vmatpush.xpose.msra.mxu0 0.0
          %724 = vmatpush.xpose.msra.mxu0 %v710
          %725 = vmatpush.xpose.msra.mxu0 %v707
          %726 = vmatpush.xpose.msra.mxu0 %v704
          %727 = vmatpush.xpose.msra.mxu0 %v701
          %728 = vmatmul.f32.gmra.mxu0 %v419
          %v729 = vpop.f32.mrf.mxu0
          %v730 = vadd.f32 0.0, %v729
          %731 = vmatmul.f32.gmra.mxu0 %v422
          %v732 = vpop.f32.mrf.mxu0
          %v733 = vadd.f32 0.0, %v732
          %734 = vdwg.mxu0
          %v736 = vsel %vm417, %v689, 0
          %v739 = vsel %vm417, %v690, 0
          %v742 = vsel %vm417, %v691, 0
          %v745 = vsel %vm417, %v692, 0
          %747 = vmatpush.xpose.msra.mxu0 0.0
          %748 = vmatpush.xpose.msra.mxu0 0.0
          %749 = vmatpush.xpose.msra.mxu0 0.0
          %750 = vmatpush.xpose.msra.mxu0 0.0
          %751 = vmatpush.xpose.msra.mxu0 0.0
          %752 = vmatpush.xpose.msra.mxu0 0.0
          %753 = vmatpush.xpose.msra.mxu0 0.0
          %754 = vmatpush.xpose.msra.mxu0 0.0
          %755 = vmatpush.xpose.msra.mxu0 0.0
          %756 = vmatpush.xpose.msra.mxu0 0.0
          %757 = vmatpush.xpose.msra.mxu0 0.0
          %758 = vmatpush.xpose.msra.mxu0 0.0
          %759 = vmatpush.xpose.msra.mxu0 %v745
          %760 = vmatpush.xpose.msra.mxu0 %v742
          %761 = vmatpush.xpose.msra.mxu0 %v739
          %762 = vmatpush.xpose.msra.mxu0 %v736
          %763 = vmatmul.f32.gmra.mxu0 %v460
          %v764 = vpop.f32.mrf.mxu0
          %v765 = vadd.f32 %v730, %v764
          %766 = vmatmul.f32.gmra.mxu0 %v463
          %v767 = vpop.f32.mrf.mxu0
          %v768 = vadd.f32 %v733, %v767
          %769 = vdwg.mxu0
          %v771 = vperm.slane %v699, 0
          %v773 = vadd.f32 %v765, %v771
          %v774 = vadd.f32 %v768, %v771
          %v775 = vxor.u32 %v773, 2147483648
          %v776 = vxor.u32 %v774, 2147483648
          %v777 = vmul.f32 %v775, 1.442695
          %v778 = vpow.pop %v777
          %v779 = vmul.f32 %v776, 1.442695
          %v780 = vpow.pop %v779
          %v781 = vadd.f32 %v778, 1.0
          %v782 = vadd.f32 %v780, 1.0
          %v783 = vrcp.pop %v781
          %v784 = vmul.f32 %v781, %v783
          %v785 = vsub.f32 1.0, %v784
          %v786 = vmul.f32 %v783, %v785
          %v787 = vadd.f32 %v783, %v786
          %vm788 = vweird.f32 %v781
          %vm789 = vweird.f32 %v783
          %vm790 = vmor %vm788, %vm789
          %v791 = vsel %vm790, %v783, %v787
          %v792 = vand.u32 2147483647, %v781
          %vm793 = vcmp.eq.f32.partialorder %v792, 8.507059e+37
          %v794 = vand.u32 %v781, 2147483648
          %v795 = vor.u32 1.1754944e-38, %v794
          %v796 = vsel %vm793, %v795, %v791
          %v797 = vmul.f32 1.0, %v796
          %v798 = vrcp.pop %v782
          %v799 = vmul.f32 %v782, %v798
          %v800 = vsub.f32 1.0, %v799
          %v801 = vmul.f32 %v798, %v800
          %v802 = vadd.f32 %v798, %v801
          %vm803 = vweird.f32 %v782
          %vm804 = vweird.f32 %v798
          %vm805 = vmor %vm803, %vm804
          %v806 = vsel %vm805, %v798, %v802
          %v807 = vand.u32 2147483647, %v782
          %vm808 = vcmp.eq.f32.partialorder %v807, 8.507059e+37
          %v809 = vand.u32 %v782, 2147483648
          %v810 = vor.u32 1.1754944e-38, %v809
          %v811 = vsel %vm808, %v810, %v806
          %v812 = vmul.f32 1.0, %v811
          %v813 = vmul.f32 %v797, %v369
          %v814 = vmul.f32 %v812, %v370
          %v815 = vmul.f32 %v813, %v548
          %v816 = vmul.f32 %v814, %v553
          %v817 = vsel %vm557, 1, 0
          %v818 = vsel %vm558, 1, 0
          %vm819 = vcmp.eq.s32.totalorder %v817, 1
          %vm820 = vcmp.eq.s32.totalorder %v818, 1
          %v821 = vsel %vm819, %v686, %v815
          %v822 = vsel %vm820, %v687, %v816
          %v823 = vsel %vm406, 1, 0
          %v824 = vsel %vm407, 1, 0
          %vm825 = vcmp.eq.s32.totalorder %v823, 1
          %vm826 = vcmp.eq.s32.totalorder %v824, 1
          %v827 = vsel %vm825, %v555, %v821
          %v828 = vsel %vm826, %v556, %v822
          %829 = vst.msk [vmem:[%s318] sm:$0xff] %vm417, %v827
          %830 = vst.msk [vmem:[%s318 + $0x8] sm:$0xff] %vm417, %v828
        $region48: #{f_dense_op_comp_forward.1} parent=43 // pred_fallthru
          _
        %p831 = pneg %p384
        // Predicated region
        $region49: #{f_dense_op_comp_forward.1} parent=43 // pred_check
          _
        $region50: #{f_dense_op_comp_forward.1} parent=43 // pred_check_branch
          %833 = sbr.rel (%p384) target = $region52
        $region51: #{f_dense_op_comp_forward.1} parent=43 // pred_region
          %p834 = scmp.ge.s32.totalorder %s366, %s367
          %s835 = scalar_select %p834, 1, 0
          %p836 = scmp.ge.s32.totalorder %s366, %s368
          %s837 = scalar_select %p836, 1, 0
          %s838 = sadd.s32 %s835, %s837
          %s839 = smul.u32 %s838, 32
          %s840 = scalar_lea.vmem %s3, %s839
          %v841 = vld [vmem:[%s840] sm:$0xff]
          %v842 = vld [vmem:[%s840 + $0x8] sm:$0xff]
          %v843 = vld [vmem:[%s840 + $0x10] sm:$0xff]
          %v844 = vld [vmem:[%s840 + $0x18] sm:$0xff]
          %s845 = scalar_lea.vmem %s4, %s839
          %v846 = vld [vmem:[%s845] sm:$0xff]
          %v847 = vld [vmem:[%s845 + $0x8] sm:$0xff]
          %v848 = vld [vmem:[%s845 + $0x10] sm:$0xff]
          %v849 = vld [vmem:[%s845 + $0x18] sm:$0xff]
          %s850 = scalar_lea.vmem %s5, %s838
          %v851 = vld [vmem:[%s850] sm:$0x1]
          %vm852 = vcmask 261120
          %v854 = vsel %vm852, %v371, 0
          %v857 = vsel %vm852, %v372, 0
          %v860 = vsel %vm852, %v846, 0
          %v863 = vsel %vm852, %v847, 0
          %v866 = vsel %vm852, %v848, 0
          %v869 = vsel %vm852, %v849, 0
          %871 = vmatpush.xpose.msra.mxu0 0.0
          %872 = vmatpush.xpose.msra.mxu0 0.0
          %873 = vmatpush.xpose.msra.mxu0 0.0
          %874 = vmatpush.xpose.msra.mxu0 0.0
          %875 = vmatpush.xpose.msra.mxu0 0.0
          %876 = vmatpush.xpose.msra.mxu0 0.0
          %877 = vmatpush.xpose.msra.mxu0 0.0
          %878 = vmatpush.xpose.msra.mxu0 0.0
          %879 = vmatpush.xpose.msra.mxu0 0.0
          %880 = vmatpush.xpose.msra.mxu0 0.0
          %881 = vmatpush.xpose.msra.mxu0 0.0
          %882 = vmatpush.xpose.msra.mxu0 0.0
          %883 = vmatpush.xpose.msra.mxu0 %v869
          %884 = vmatpush.xpose.msra.mxu0 %v866
          %885 = vmatpush.xpose.msra.mxu0 %v863
          %886 = vmatpush.xpose.msra.mxu0 %v860
          %887 = vmatmul.f32.gmra.mxu0 %v854
          %v888 = vpop.f32.mrf.mxu0
          %v889 = vadd.f32 0.0, %v888
          %890 = vmatmul.f32.gmra.mxu0 %v857
          %v891 = vpop.f32.mrf.mxu0
          %v892 = vadd.f32 0.0, %v891
          %893 = vdwg.mxu0
          %v895 = vsel %vm852, %v369, 0
          %v898 = vsel %vm852, %v370, 0
          %v901 = vsel %vm852, %v841, 0
          %v904 = vsel %vm852, %v842, 0
          %v907 = vsel %vm852, %v843, 0
          %v910 = vsel %vm852, %v844, 0
          %912 = vmatpush.xpose.msra.mxu0 0.0
          %913 = vmatpush.xpose.msra.mxu0 0.0
          %914 = vmatpush.xpose.msra.mxu0 0.0
          %915 = vmatpush.xpose.msra.mxu0 0.0
          %916 = vmatpush.xpose.msra.mxu0 0.0
          %917 = vmatpush.xpose.msra.mxu0 0.0
          %918 = vmatpush.xpose.msra.mxu0 0.0
          %919 = vmatpush.xpose.msra.mxu0 0.0
          %920 = vmatpush.xpose.msra.mxu0 0.0
          %921 = vmatpush.xpose.msra.mxu0 0.0
          %922 = vmatpush.xpose.msra.mxu0 0.0
          %923 = vmatpush.xpose.msra.mxu0 0.0
          %924 = vmatpush.xpose.msra.mxu0 %v910
          %925 = vmatpush.xpose.msra.mxu0 %v907
          %926 = vmatpush.xpose.msra.mxu0 %v904
          %927 = vmatpush.xpose.msra.mxu0 %v901
          %928 = vmatmul.f32.gmra.mxu0 %v895
          %v929 = vpop.f32.mrf.mxu0
          %v930 = vadd.f32 %v889, %v929
          %931 = vmatmul.f32.gmra.mxu0 %v898
          %v932 = vpop.f32.mrf.mxu0
          %v933 = vadd.f32 %v892, %v932
          %934 = vdwg.mxu0
          %v936 = vperm.slane %v851, 0
          %v938 = vadd.f32 %v930, %v936
          %v939 = vadd.f32 %v933, %v936
          %v940 = vxor.u32 %v938, 2147483648
          %v941 = vxor.u32 %v939, 2147483648
          %v942 = vmul.f32 %v940, 1.442695
          %v943 = vpow.pop %v942
          %v944 = vmul.f32 %v941, 1.442695
          %v945 = vpow.pop %v944
          %v946 = vadd.f32 %v943, 1.0
          %v947 = vadd.f32 %v945, 1.0
          %v948 = vrcp.pop %v946
          %v949 = vmul.f32 %v946, %v948
          %v950 = vsub.f32 1.0, %v949
          %v951 = vmul.f32 %v948, %v950
          %v952 = vadd.f32 %v948, %v951
          %vm953 = vweird.f32 %v946
          %vm954 = vweird.f32 %v948
          %vm955 = vmor %vm953, %vm954
          %v956 = vsel %vm955, %v948, %v952
          %v957 = vand.u32 2147483647, %v946
          %vm958 = vcmp.eq.f32.partialorder %v957, 8.507059e+37
          %v959 = vand.u32 %v946, 2147483648
          %v960 = vor.u32 1.1754944e-38, %v959
          %v961 = vsel %vm958, %v960, %v956
          %v962 = vmul.f32 1.0, %v961
          %v963 = vrcp.pop %v947
          %v964 = vmul.f32 %v947, %v963
          %v965 = vsub.f32 1.0, %v964
          %v966 = vmul.f32 %v963, %v965
          %v967 = vadd.f32 %v963, %v966
          %vm968 = vweird.f32 %v947
          %vm969 = vweird.f32 %v963
          %vm970 = vmor %vm968, %vm969
          %v971 = vsel %vm970, %v963, %v967
          %v972 = vand.u32 2147483647, %v947
          %vm973 = vcmp.eq.f32.partialorder %v972, 8.507059e+37
          %v974 = vand.u32 %v947, 2147483648
          %v975 = vor.u32 1.1754944e-38, %v974
          %v976 = vsel %vm973, %v975, %v971
          %v977 = vmul.f32 1.0, %v976
          %v978 = vmul.f32 %v962, %v369
          %v979 = vmul.f32 %v977, %v370
          %981 = vset.pattern.permute.xlu0 0
          %982 = vperm.xlu0 %981, %v373
          %v983 = vpop.permute.xlu0 %982
          %986 = vset.pattern.permute.xlu0 0
          %987 = vperm.xlu0 %986, %v374
          %v988 = vpop.permute.xlu0 %987
          %v990 = vmul.f32 %v978, %v983
          %v991 = vmul.f32 %v979, %v988
          %992 = vst.msk [vmem:[%s318] sm:$0xff] %vm852, %v990
          %993 = vst.msk [vmem:[%s318 + $0x8] sm:$0xff] %vm852, %v991
        $region52: #{f_dense_op_comp_forward.1} parent=43 // pred_fallthru
          _
        %s994 = sand.u32 %s175, 1
        %s995 = sand.u32 %s175, 1
        %s996 = smul.addr %s995, 16
        %s997 = scalar_lea.vmem [#allocation4], %s996
        // Predicated region
        $region53: #{f_dense_op_comp_forward.1} parent=43 // pred_check
          %p998 = pneg %p185
        $region54: #{f_dense_op_comp_forward.1} parent=43 // pred_check_branch
          %1000 = sbr.rel (%p998) target = $region56
        $region55: #{f_dense_op_comp_forward.1} parent=43 // pred_region
          %s1001 = smul.u32 2, %s26
          %s1002 = ssub.s32 9, %s1001
          %p1003 = scmp.lt.s32.totalorder %s1002, 2
          %s1004 = scalar_select %p1003, %s1002, 2
          %s1005 = smul.u32 8, %s1004
          %p1006 = scmp.ne.s32.totalorder 0, %s1005
          %s1007 = smul.addr %s1001, 8
          %s1008 = scalar_lea.vmem %s7, %s1007
          // Predicated region
          $region57: #{f_dense_op_comp_forward.1} parent=55 // pred_check
            %p1009 = pneg %p1006
          $region58: #{f_dense_op_comp_forward.1} parent=55 // pred_check_branch
            %1011 = sbr.rel (%p1009) target = $region60
          $region59: #{f_dense_op_comp_forward.1} parent=55 // pred_region
            // Predicated region
            $region61: #{f_dense_op_comp_forward.1} parent=59 // pred_check
              _
            $region62: #{f_dense_op_comp_forward.1} parent=59 // pred_check_branch
              %1013 = sbr.rel (0) target = $region64
            $region63: #{f_dense_op_comp_forward.1} parent=59 // pred_region
              // Predicated region
              $region83: #{f_dense_op_comp_forward.1} parent=63 // pred_check
                _
              $region84: #{f_dense_op_comp_forward.1} parent=63 // pred_check_branch
                %1065 = sbr.rel (0) target = $region86
              $region85: #{f_dense_op_comp_forward.1} parent=63 // pred_region
                %s1066 = sshrl.u32 %s1004, 1
                // While loop
                $region87: #{f_dense_op_comp_forward.1} parent=85 // loop_pre_header
                  _
                $region88: #{f_dense_op_comp_forward.1} parent=85 // loop_header
                  %s1068 = sphi 0, %s1070
                  %p1069 = scmp.ge.s32.totalorder %s1068, %s1066
                  %s1073 = sphi 0, %s1082
                  %s1074 = sphi %s997, %s1085
                  %s1075 = sphi %s1008, %s1086
                $region89: #{f_dense_op_comp_forward.1} parent=85 // loop_header_branch
                  %1072 = sbr.rel (%p1069) target = $region93
                $region90: #{f_dense_op_comp_forward.1} parent=85 // loop_body
                  %v1076 = vld [vmem:[%s1074] sm:$0xff]
                  %1077 = vst [vmem:[%s1075] sm:$0xff] %v1076
                  %v1078 = vld [vmem:[%s1074 + $0x8] sm:$0xff]
                  %1079 = vst [vmem:[%s1075 + $0x8] sm:$0xff] %v1078
                  %s1080 = sadd.s32 1, %s1073
                  %p1081 = scmp.ge.s32.totalorder %s1080, %s1066
                  %s1082 = scalar_select %p1081, 0, %s1080
                  %s1083 = smul.u32 %s1082, 16
                  %s1084 = smul.u32 %s1082, 16
                  %s1085 = scalar_lea.vmem %s997, %s1083 [#allocation4]
                  %s1086 = scalar_lea.vmem %s1008, %s1084
                $region91: #{f_dense_op_comp_forward.1} parent=85 // loop_footer
                  %s1070 = sadd.s32 %s1068, 1
                $region92: #{f_dense_op_comp_forward.1} parent=85 // loop_footer_branch
                  %1067 = sbr.rel target = $region88
                $region93: #{f_dense_op_comp_forward.1} parent=85 // loop_exit
                  _
                %s1087 = sshrl.u32 %s1004, 1
                %s1088 = sand.u32 %s1004, 1
                %s1089 = smul.u32 %s1087, 2
                %s1090 = smul.u32 8, %s1089
                %s1091 = scalar_lea.vmem %s997, %s1090 [#allocation4]
                %s1092 = smul.u32 8, %s1089
                %s1093 = scalar_lea.vmem %s1008, %s1092
                // While loop
                $region94: #{f_dense_op_comp_forward.1} parent=85 // loop_pre_header
                  _
                $region95: #{f_dense_op_comp_forward.1} parent=85 // loop_header
                  %s1095 = sphi 0, %s1097
                  %p1096 = scmp.ge.s32.totalorder %s1095, %s1088
                  %s1100 = sphi 0, %s1107
                  %s1101 = sphi %s1091, %s1110
                  %s1102 = sphi %s1093, %s1111
                $region96: #{f_dense_op_comp_forward.1} parent=85 // loop_header_branch
                  %1099 = sbr.rel (%p1096) target = $region100
                $region97: #{f_dense_op_comp_forward.1} parent=85 // loop_body
                  %v1103 = vld [vmem:[%s1101] sm:$0xff]
                  %1104 = vst [vmem:[%s1102] sm:$0xff] %v1103
                  %s1105 = sadd.s32 1, %s1100
                  %p1106 = scmp.ge.s32.totalorder %s1105, %s1088
                  %s1107 = scalar_select %p1106, 0, %s1105
                  %s1108 = smul.u32 %s1107, 8
                  %s1109 = smul.u32 %s1107, 8
                  %s1110 = scalar_lea.vmem %s1091, %s1108 [#allocation4]
                  %s1111 = scalar_lea.vmem %s1093, %s1109
                $region98: #{f_dense_op_comp_forward.1} parent=85 // loop_footer
                  %s1097 = sadd.s32 %s1095, 1
                $region99: #{f_dense_op_comp_forward.1} parent=85 // loop_footer_branch
                  %1094 = sbr.rel target = $region95
                $region100: #{f_dense_op_comp_forward.1} parent=85 // loop_exit
                  _
              $region86: #{f_dense_op_comp_forward.1} parent=63 // pred_fallthru
                _
              // Predicated region
              $region101: #{f_dense_op_comp_forward.1} parent=63 // pred_check
                _
              $region102: #{f_dense_op_comp_forward.1} parent=63 // pred_check_branch
                %1113 = sbr.rel target = $region104
              $region103: #{f_dense_op_comp_forward.1} parent=63 // pred_region
                _
              $region104: #{f_dense_op_comp_forward.1} parent=63 // pred_fallthru
                _
            $region64: #{f_dense_op_comp_forward.1} parent=59 // pred_fallthru
              _
            // Predicated region
            $region65: #{f_dense_op_comp_forward.1} parent=59 // pred_check
              _
            $region66: #{f_dense_op_comp_forward.1} parent=59 // pred_check_branch
              %1015 = sbr.rel target = $region68
            $region67: #{f_dense_op_comp_forward.1} parent=59 // pred_region
              %s1017 = ssub.s32 256, 1
              %s1018 = sshrl.u32 %s1004, 1
              // While loop
              $region69: #{f_dense_op_comp_forward.1} parent=67 // loop_pre_header
                _
              $region70: #{f_dense_op_comp_forward.1} parent=67 // loop_header
                %s1020 = sphi 0, %s1022
                %p1021 = scmp.ge.s32.totalorder %s1020, %s1018
                %s1025 = sphi 0, %s1034
                %s1026 = sphi %s997, %s1037
                %s1027 = sphi %s1008, %s1038
              $region71: #{f_dense_op_comp_forward.1} parent=67 // loop_header_branch
                %1024 = sbr.rel (%p1021) target = $region75
              $region72: #{f_dense_op_comp_forward.1} parent=67 // loop_body
                %v1028 = vld [vmem:[%s1026] sm:%s1017]
                %1029 = vst [vmem:[%s1027] sm:%s1017] %v1028
                %v1030 = vld [vmem:[%s1026 + $0x8] sm:%s1017]
                %1031 = vst [vmem:[%s1027 + $0x8] sm:%s1017] %v1030
                %s1032 = sadd.s32 1, %s1025
                %p1033 = scmp.ge.s32.totalorder %s1032, %s1018
                %s1034 = scalar_select %p1033, 0, %s1032
                %s1035 = smul.u32 %s1034, 16
                %s1036 = smul.u32 %s1034, 16
                %s1037 = scalar_lea.vmem %s997, %s1035 [#allocation4]
                %s1038 = scalar_lea.vmem %s1008, %s1036
              $region73: #{f_dense_op_comp_forward.1} parent=67 // loop_footer
                %s1022 = sadd.s32 %s1020, 1
              $region74: #{f_dense_op_comp_forward.1} parent=67 // loop_footer_branch
                %1019 = sbr.rel target = $region70
              $region75: #{f_dense_op_comp_forward.1} parent=67 // loop_exit
                _
              %s1039 = sshrl.u32 %s1004, 1
              %s1040 = sand.u32 %s1004, 1
              %s1041 = smul.u32 %s1039, 2
              %s1042 = smul.u32 8, %s1041
              %s1043 = scalar_lea.vmem %s997, %s1042 [#allocation4]
              %s1044 = smul.u32 8, %s1041
              %s1045 = scalar_lea.vmem %s1008, %s1044
              // While loop
              $region76: #{f_dense_op_comp_forward.1} parent=67 // loop_pre_header
                _
              $region77: #{f_dense_op_comp_forward.1} parent=67 // loop_header
                %s1047 = sphi 0, %s1049
                %p1048 = scmp.ge.s32.totalorder %s1047, %s1040
                %s1052 = sphi 0, %s1059
                %s1053 = sphi %s1043, %s1062
                %s1054 = sphi %s1045, %s1063
              $region78: #{f_dense_op_comp_forward.1} parent=67 // loop_header_branch
                %1051 = sbr.rel (%p1048) target = $region82
              $region79: #{f_dense_op_comp_forward.1} parent=67 // loop_body
                %v1055 = vld [vmem:[%s1053] sm:%s1017]
                %1056 = vst [vmem:[%s1054] sm:%s1017] %v1055
                %s1057 = sadd.s32 1, %s1052
                %p1058 = scmp.ge.s32.totalorder %s1057, %s1040
                %s1059 = scalar_select %p1058, 0, %s1057
                %s1060 = smul.u32 %s1059, 8
                %s1061 = smul.u32 %s1059, 8
                %s1062 = scalar_lea.vmem %s1043, %s1060 [#allocation4]
                %s1063 = scalar_lea.vmem %s1045, %s1061
              $region80: #{f_dense_op_comp_forward.1} parent=67 // loop_footer
                %s1049 = sadd.s32 %s1047, 1
              $region81: #{f_dense_op_comp_forward.1} parent=67 // loop_footer_branch
                %1046 = sbr.rel target = $region77
              $region82: #{f_dense_op_comp_forward.1} parent=67 // loop_exit
                _
            $region68: #{f_dense_op_comp_forward.1} parent=59 // pred_fallthru
              _
          $region60: #{f_dense_op_comp_forward.1} parent=55 // pred_fallthru
            _
          %1114 = vnop
        $region56: #{f_dense_op_comp_forward.1} parent=43 // pred_fallthru
          _
      $region44: #{f_dense_op_comp_forward.1} parent=5 // pred_fallthru
        _
      %p1115 = scmp.le.s32.totalorder 2, %s21
      // Predicated region
      $region105: #{f_dense_op_comp_forward.1} parent=5 // pred_check
        %p1116 = pneg %p1115
      $region106: #{f_dense_op_comp_forward.1} parent=5 // pred_check_branch
        %1118 = sbr.rel (%p1116) target = $region108
      $region107: #{f_dense_op_comp_forward.1} parent=5 // pred_region
        %s1119 = ssub.s32 %s21, 2
        // Predicated region
        $region109: #{f_dense_op_comp_forward.1} parent=107 // pred_check
          %p1120 = pneg %p191
        $region110: #{f_dense_op_comp_forward.1} parent=107 // pred_check_branch
          %1122 = sbr.rel (%p1120) target = $region112
        $region111: #{f_dense_op_comp_forward.1} parent=107 // pred_region
          %s1123 = sand.u32 %s176, 1
          %s1124 = sand.u32 %s176, 1
          %s1125 = smul.addr %s1124, 16
          %s1126 = scalar_lea.vmem [#allocation4], %s1125
        $region112: #{f_dense_op_comp_forward.1} parent=107 // pred_fallthru
          _
      $region108: #{f_dense_op_comp_forward.1} parent=5 // pred_fallthru
        _
    $region6: #{f_dense_op_comp_forward.1} parent=1 // loop_footer
      %s25 = sadd.s32 1, %s21
    $region7: #{f_dense_op_comp_forward.1} parent=1 // loop_footer_branch
      %20 = sbr.rel target = $region3
    $region8: #{f_dense_op_comp_forward.1} parent=1 // loop_exit
      _

</llo_original>
